<compile_context>
chip_gen: v6e
topology: v6e:2x2x1
jax: 0.10.0
libtpu: 0.0.40
codegen_flags: <defaults>
</compile_context>

<pallas_src>
import functools

import jax
import jax.numpy as jnp
from jax import lax
from jax.experimental import pallas as pl
from jax.experimental.pallas import tpu as pltpu

SLAB_LANE = 128                       # lane-dense slab width
TARGET_BLOCK_BYTES = 2 * 1024 * 1024  # per-stream input block target
VMEM_LIMIT_BYTES = 40 * 1024 * 1024   # comfortably above need, below v7x 64 MiB


def _cdiv(a, b):
    return -(-a // b)


def _round_up(a, b):
    return _cdiv(a, b) * b


def _fold_rows(x, target):
    """Tree-fold the leading axis of a value down to `target` rows (VPU adds)."""
    while x.shape[0] > target:
        half = x.shape[0] // 2
        assert half * 2 == x.shape[0], x.shape
        x = x[:half] + x[half:]
    return x


def _make_dice_kernel(*, has_weights, n_chunks, chunk, acc_rows, row_tile,
                      valid_rows, needs_mask, unroll):
    def kernel(*refs):
        if has_weights:
            p_ref, g_ref, m_ref, w_ref, oi_ref, op_ref, og_ref = refs
        else:
            p_ref, g_ref, m_ref, oi_ref, op_ref, og_ref = refs
            w_ref = None

        t = pl.program_id(0)

        @pl.when(t == 0)
        def _init():
            oi_ref[...] = jnp.zeros_like(oi_ref)
            op_ref[...] = jnp.zeros_like(op_ref)
            og_ref[...] = jnp.zeros_like(og_ref)

        lane = p_ref.shape[1]
        if needs_mask:
            block_row0 = t * row_tile
            # Hoisted once per grid step; reused by every chunk.
            row_iota = lax.broadcasted_iota(jnp.int32, (chunk, lane), 0)

        def body(i, carry):
            acc_i, acc_p, acc_g = carry
            off = pl.multiple_of(i * chunk, chunk)
            # Native-dtype loads; f32 cast on the VPU (hidden under DMA).
            p = p_ref[pl.ds(off, chunk), :].astype(jnp.float32)
            g = g_ref[pl.ds(off, chunk), :].astype(jnp.float32)
            m = m_ref[pl.ds(off, chunk), :].astype(jnp.float32)
            if w_ref is not None:
                m = m * w_ref[pl.ds(off, chunk), :].astype(jnp.float32)
            if needs_mask:
                # Rows past the array end hold unspecified data; select them to
                # zero BEFORE multiplying so NaN/Inf garbage cannot propagate.
                valid = row_iota < (valid_rows - (block_row0 + off))
                p = jnp.where(valid, p, 0.0)
                g = jnp.where(valid, g, 0.0)
                m = jnp.where(valid, m, 0.0)
            pm = p * m
            gm = g * m
            acc_i = acc_i + _fold_rows(pm * g, acc_rows)
            acc_p = acc_p + _fold_rows(pm, acc_rows)
            acc_g = acc_g + _fold_rows(gm, acc_rows)
            return acc_i, acc_p, acc_g

        zero = jnp.zeros((acc_rows, lane), jnp.float32)
        acc_i, acc_p, acc_g = lax.fori_loop(
            0, n_chunks, body, (zero, zero, zero), unroll=unroll)

        # One small resident-output RMW per grid step.
        oi_ref[...] += acc_i
        op_ref[...] += acc_p
        og_ref[...] += acc_g

    return kernel


def _plan_tiling(streams, rows, lane):
    itemsizes = [jnp.dtype(s.dtype).itemsize for s in streams]
    # Chunk rows = packed-vreg sublane count of the narrowest stream dtype so
    # every dynamic sublane offset is aligned to whole packed vregs.
    chunk = max(max(8, 32 // it) for it in itemsizes)
    lane_pad = _round_up(lane, 128)

    if rows < chunk:
        # Tiny input: one full-extent block, one chunk, no masking needed.
        row_tile = chunk = acc_rows = rows
        grid = n_chunks = 1
        needs_mask = False
        unroll = 1
    else:
        tr_cap = max(chunk,
                     (TARGET_BLOCK_BYTES // (lane_pad * max(itemsizes)))
                     // chunk * chunk)
        row_tile = min(tr_cap, rows // chunk * chunk)
        grid = _cdiv(rows, row_tile)
        needs_mask = (grid * row_tile != rows)
        n_chunks = row_tile // chunk
        acc_rows = 8
        assert row_tile % chunk == 0 and chunk % 8 == 0, (row_tile, chunk)
        chunk_bytes_f32 = chunk * lane_pad * 4
        if chunk_bytes_f32 <= 8 * 1024:
            unroll = 4
        elif chunk_bytes_f32 <= 32 * 1024:
            unroll = 2
        else:
            unroll = 1
        unroll = max(1, min(unroll, n_chunks))

    total = rows * lane
    bytes_accessed = (sum(s.size * it for s, it in zip(streams, itemsizes))
                      + 3 * acc_rows * lane * 4)
    return dict(rows=rows, row_tile=row_tile, chunk=chunk, acc_rows=acc_rows,
                grid=grid, n_chunks=n_chunks, needs_mask=needs_mask,
                unroll=unroll, flops=7 * total, bytes=bytes_accessed)


def _dice_partial_sums(streams, plan):
    lane = streams[0].shape[1]
    in_spec = pl.BlockSpec((plan["row_tile"], lane), lambda t: (t, 0))
    out_spec = pl.BlockSpec((plan["acc_rows"], lane), lambda t: (0, 0))
    out_sds = jax.ShapeDtypeStruct((plan["acc_rows"], lane), jnp.float32)

    kernel = _make_dice_kernel(
        has_weights=(len(streams) == 4),
        n_chunks=plan["n_chunks"],
        chunk=plan["chunk"],
        acc_rows=plan["acc_rows"],
        row_tile=plan["row_tile"],
        valid_rows=plan["rows"],
        needs_mask=plan["needs_mask"],
        unroll=plan["unroll"],
    )

    return pl.pallas_call(
        kernel,
        out_shape=(out_sds, out_sds, out_sds),
        grid=(plan["grid"],),
        in_specs=[in_spec] * len(streams),
        out_specs=(out_spec, out_spec, out_spec),
        compiler_params=pltpu.CompilerParams(
            dimension_semantics=("arbitrary",),
            vmem_limit_bytes=VMEM_LIMIT_BYTES,
        ),
        cost_estimate=pl.CostEstimate(
            flops=plan["flops"], transcendentals=0,
            bytes_accessed=plan["bytes"]),
    )(*streams)


@functools.partial(jax.jit, static_argnames=("eps",))
def dice_loss(pred, gt, mask, weights=None, *, eps=1e-6):
    """Pallas equivalent of DiceLoss.forward.

    pred: (N, 1, H, W)   gt: (N, 1, H, W)   mask: (N, H, W)
    weights (optional): (N, H, W)
    Returns a scalar float32 loss.
    """
    assert pred.ndim == 4, pred.ndim
    p = pred[:, 0, :, :]
    g = gt[:, 0, :, :]
    assert p.shape == g.shape
    assert p.shape == mask.shape
    if weights is not None:
        assert weights.shape == mask.shape

    n, h, w = p.shape
    total = n * h * w

    arrs = [p, g, mask] + ([weights] if weights is not None else [])
    # Keep streams narrow; only bools are re-typed (1 byte -> 1 byte).
    arrs = [a.astype(jnp.int8) if a.dtype == jnp.bool_ else a for a in arrs]

    # Zero-copy reshapes only (no jnp.pad extra HBM pass):
    if total % SLAB_LANE == 0:
        rows, lane = total // SLAB_LANE, SLAB_LANE   # lane-dense slab
    else:
        rows, lane = n * h, w                        # natural layout fallback
    streams = [a.reshape(rows, lane) for a in arrs]

    plan = _plan_tiling(streams, rows, lane)
    o_inter, o_pm, o_gm = _dice_partial_sums(streams, plan)

    # Tiny final cross-lane reduce + eps / divide glue in plain JAX.
    intersection = jnp.sum(o_inter)
    union = jnp.sum(o_pm) + jnp.sum(o_gm) + jnp.float32(eps)
    return 1.0 - 2.0 * intersection / union


def _reference_dice_loss(pred, gt, mask, weights=None, eps=1e-6):
    p = pred[:, 0, :, :].astype(jnp.float32)
    g = gt[:, 0, :, :].astype(jnp.float32)
    m = mask.astype(jnp.float32)
    if weights is not None:
        m = weights.astype(jnp.float32) * m
    inter = jnp.sum(p * g * m)
    union = jnp.sum(p * m) + jnp.sum(g * m) + eps
    return 1.0 - 2.0 * inter / union


if __name__ == "__main__":
    key = jax.random.PRNGKey(0)
    k1, k2, k3, k4 = jax.random.split(key, 4)

    N, C, H, W = 2, 1, 16, 16
    pred = jax.nn.sigmoid(jax.random.normal(k1, (N, C, H, W), jnp.float32))
    gt = (jax.random.uniform(k2, (N, C, H, W)) > 0.5).astype(jnp.float32)
    mask = (jax.random.uniform(k3, (N, H, W)) > 0.2).astype(jnp.float32)
    weights = jax.random.uniform(k4, (N, H, W), jnp.float32)

    # Unweighted path.
    loss = jax.block_until_ready(dice_loss(pred, gt, mask))
    ref = _reference_dice_loss(pred, gt, mask)
    assert jnp.allclose(loss, ref, rtol=1e-5, atol=1e-6), (loss, ref)
    assert float(loss) <= 1.0 + 1e-6

    # Weighted path (weights*mask fused inside the kernel).
    loss_w = jax.block_until_ready(dice_loss(pred, gt, mask, weights))
    ref_w = _reference_dice_loss(pred, gt, mask, weights)
    assert jnp.allclose(loss_w, ref_w, rtol=1e-5, atol=1e-6), (loss_w, ref_w)

    # Native-dtype streaming path (bf16 pred, in-kernel f32 cast).
    pred_bf16 = pred.astype(jnp.bfloat16)
    loss_b = jax.block_until_ready(dice_loss(pred_bf16, gt, mask))
    ref_b = _reference_dice_loss(pred_bf16.astype(jnp.float32), gt, mask)
    assert jnp.allclose(loss_b, ref_b, rtol=1e-4, atol=1e-5), (loss_b, ref_b)

    print("KERNEL_OK")
</pallas_src>

<mosaic_0001>
module attributes {stable_mosaic.version = 11 : i64} {
  func.func @kernel(%arg0: i32, %arg1: memref<4x128xf32, #tpu.memory_space<vmem>>, %arg2: memref<4x128xf32, #tpu.memory_space<vmem>>, %arg3: memref<4x128xf32, #tpu.memory_space<vmem>>, %arg4: memref<4x128xf32, #tpu.memory_space<vmem>>, %arg5: memref<4x128xf32, #tpu.memory_space<vmem>>, %arg6: memref<4x128xf32, #tpu.memory_space<vmem>>) attributes {dimension_semantics = [#tpu.dimension_semantics<arbitrary>], iteration_bounds = array<i64: 1>, scalar_prefetch = 0 : i64, scratch_operands = 0 : i64, tpu.core_type = #tpu.core_type<tc>, window_params = [{transform_indices = @transform_0, window_bounds = array<i64: 4, 128>}, {transform_indices = @transform_1, window_bounds = array<i64: 4, 128>}, {transform_indices = @transform_2, window_bounds = array<i64: 4, 128>}, {pipeline_mode = #tpu.pipeline_mode<synchronous>, transform_indices = @transform_3, window_bounds = array<i64: 4, 128>}, {pipeline_mode = #tpu.pipeline_mode<synchronous>, transform_indices = @transform_4, window_bounds = array<i64: 4, 128>}, {pipeline_mode = #tpu.pipeline_mode<synchronous>, transform_indices = @transform_5, window_bounds = array<i64: 4, 128>}]} {
    %c0_i32 = arith.constant 0 : i32
    %0 = arith.cmpi eq, %arg0, %c0_i32 : i32
    %1 = arith.extui %0 : i1 to i32
    %c0_i32_0 = arith.constant 0 : i32
    %2 = arith.cmpi ne, %1, %c0_i32_0 : i32
    scf.if %2 {
      %cst_16 = arith.constant 0.000000e+00 : f32
      %27 = vector.broadcast %cst_16 : f32 to vector<4x128xf32>
      %c0_17 = arith.constant 0 : index
      %c0_18 = arith.constant 0 : index
      %28 = vector.load %arg4[%c0_17, %c0_18] : memref<4x128xf32, #tpu.memory_space<vmem>>, vector<4x128xf32>
      tpu.vector_store %arg4[%c0_17, %c0_18], %27 {strides = array<i32>} : memref<4x128xf32, #tpu.memory_space<vmem>>, vector<4x128xf32>,
      %cst_19 = arith.constant 0.000000e+00 : f32
      %29 = vector.broadcast %cst_19 : f32 to vector<4x128xf32>
      %c0_20 = arith.constant 0 : index
      %c0_21 = arith.constant 0 : index
      %30 = vector.load %arg5[%c0_20, %c0_21] : memref<4x128xf32, #tpu.memory_space<vmem>>, vector<4x128xf32>
      tpu.vector_store %arg5[%c0_20, %c0_21], %29 {strides = array<i32>} : memref<4x128xf32, #tpu.memory_space<vmem>>, vector<4x128xf32>,
      %cst_22 = arith.constant 0.000000e+00 : f32
      %31 = vector.broadcast %cst_22 : f32 to vector<4x128xf32>
      %c0_23 = arith.constant 0 : index
      %c0_24 = arith.constant 0 : index
      %32 = vector.load %arg6[%c0_23, %c0_24] : memref<4x128xf32, #tpu.memory_space<vmem>>, vector<4x128xf32>
      tpu.vector_store %arg6[%c0_23, %c0_24], %31 {strides = array<i32>} : memref<4x128xf32, #tpu.memory_space<vmem>>, vector<4x128xf32>,
    } else {
    }
    %cst = arith.constant 0.000000e+00 : f32
    %3 = vector.broadcast %cst : f32 to vector<4x128xf32>
    %c0_i32_1 = arith.constant 0 : i32
    %c4_i32 = arith.constant 4 : i32
    %4 = arith.muli %c0_i32_1, %c4_i32 : i32
    %5 = tpu.assume_multiple %4, 4 : i32
    %6 = arith.index_cast %5 : i32 to index
    %c0 = arith.constant 0 : index
    %7 = vector.load %arg1[%6, %c0] : memref<4x128xf32, #tpu.memory_space<vmem>>, vector<4x128xf32>
    %8 = arith.index_cast %5 : i32 to index
    %c0_2 = arith.constant 0 : index
    %9 = vector.load %arg2[%8, %c0_2] : memref<4x128xf32, #tpu.memory_space<vmem>>, vector<4x128xf32>
    %10 = arith.index_cast %5 : i32 to index
    %c0_3 = arith.constant 0 : index
    %11 = vector.load %arg3[%10, %c0_3] : memref<4x128xf32, #tpu.memory_space<vmem>>, vector<4x128xf32>
    %12 = arith.mulf %7, %11 : vector<4x128xf32>
    %13 = arith.mulf %9, %11 : vector<4x128xf32>
    %14 = arith.mulf %12, %9 : vector<4x128xf32>
    %15 = arith.addf %3, %14 : vector<4x128xf32>
    %16 = arith.addf %3, %12 : vector<4x128xf32>
    %17 = arith.addf %3, %13 : vector<4x128xf32>
    %c1_i32 = arith.constant 1 : i32
    %c0_4 = arith.constant 0 : index
    %c0_5 = arith.constant 0 : index
    %18 = vector.load %arg4[%c0_4, %c0_5] : memref<4x128xf32, #tpu.memory_space<vmem>>, vector<4x128xf32>
    %19 = arith.addf %18, %15 : vector<4x128xf32>
    %c0_6 = arith.constant 0 : index
    %c0_7 = arith.constant 0 : index
    %20 = vector.load %arg4[%c0_6, %c0_7] : memref<4x128xf32, #tpu.memory_space<vmem>>, vector<4x128xf32>
    tpu.vector_store %arg4[%c0_6, %c0_7], %19 {strides = array<i32>} : memref<4x128xf32, #tpu.memory_space<vmem>>, vector<4x128xf32>,
    %c0_8 = arith.constant 0 : index
    %c0_9 = arith.constant 0 : index
    %21 = vector.load %arg5[%c0_8, %c0_9] : memref<4x128xf32, #tpu.memory_space<vmem>>, vector<4x128xf32>
    %22 = arith.addf %21, %16 : vector<4x128xf32>
    %c0_10 = arith.constant 0 : index
    %c0_11 = arith.constant 0 : index
    %23 = vector.load %arg5[%c0_10, %c0_11] : memref<4x128xf32, #tpu.memory_space<vmem>>, vector<4x128xf32>
    tpu.vector_store %arg5[%c0_10, %c0_11], %22 {strides = array<i32>} : memref<4x128xf32, #tpu.memory_space<vmem>>, vector<4x128xf32>,
    %c0_12 = arith.constant 0 : index
    %c0_13 = arith.constant 0 : index
    %24 = vector.load %arg6[%c0_12, %c0_13] : memref<4x128xf32, #tpu.memory_space<vmem>>, vector<4x128xf32>
    %25 = arith.addf %24, %17 : vector<4x128xf32>
    %c0_14 = arith.constant 0 : index
    %c0_15 = arith.constant 0 : index
    %26 = vector.load %arg6[%c0_14, %c0_15] : memref<4x128xf32, #tpu.memory_space<vmem>>, vector<4x128xf32>
    tpu.vector_store %arg6[%c0_14, %c0_15], %25 {strides = array<i32>} : memref<4x128xf32, #tpu.memory_space<vmem>>, vector<4x128xf32>,
    return
  }
  func.func @transform_0(%arg0: i32) -> (i32, i32) {
    %c0_i32 = arith.constant 0 : i32
    %c0_i32_0 = arith.constant 0 : i32
    return %arg0, %c0_i32 : i32, i32
  }
  func.func @transform_1(%arg0: i32) -> (i32, i32) {
    %c0_i32 = arith.constant 0 : i32
    %c0_i32_0 = arith.constant 0 : i32
    return %arg0, %c0_i32 : i32, i32
  }
  func.func @transform_2(%arg0: i32) -> (i32, i32) {
    %c0_i32 = arith.constant 0 : i32
    %c0_i32_0 = arith.constant 0 : i32
    return %arg0, %c0_i32 : i32, i32
  }
  func.func @transform_3(%arg0: i32) -> (i32, i32) {
    %c0_i32 = arith.constant 0 : i32
    %c0_i32_0 = arith.constant 0 : i32
    %c0_i32_1 = arith.constant 0 : i32
    return %c0_i32, %c0_i32_0 : i32, i32
  }
  func.func @transform_4(%arg0: i32) -> (i32, i32) {
    %c0_i32 = arith.constant 0 : i32
    %c0_i32_0 = arith.constant 0 : i32
    %c0_i32_1 = arith.constant 0 : i32
    return %c0_i32, %c0_i32_0 : i32, i32
  }
  func.func @transform_5(%arg0: i32) -> (i32, i32) {
    %c0_i32 = arith.constant 0 : i32
    %c0_i32_0 = arith.constant 0 : i32
    %c0_i32_1 = arith.constant 0 : i32
    return %c0_i32, %c0_i32_0 : i32, i32
  }
}

</mosaic_0001>

<llo_original>
// kernel: squeeze.3
$region0: #{squeeze.3}
  %s0 = inlined_call_operand.vmem [shape: f32[2,1,16,16], index: 0, kind: input, shape index: {}]
  %s1 = inlined_call_operand.vmem [shape: f32[4,128], index: 1, kind: output, shape index: {}]
  $region1: #{squeeze.3} parent=0
    #allocation0 [shape = 'u8[4096]{0}', space=vmem, size = 0x1000, scoped, tag = 'scoped mem for output reshape']
    %v2 = vld [vmem:[%s0] ss:$8 sm:$0xf]
    %vm3 = vcmask 130048
    %4 = vst.msk [vmem:[#allocation0] sm:$0xf] %vm3, %v2
    %s5 = scalar_lea.vmem %s0, 7
    %v6 = vld [vmem:[%s5] ss:$8 sm:$0xf]
    %7 = vrot.lane.b32.xlu0 %v6, 112
    %v8 = vpop.permute.xlu0 %7
    %vm9 = vcmask 1048448
    %10 = vst.msk [vmem:[#allocation0] sm:$0xf] %vm9, %v8
    %s11 = scalar_lea.vmem %s0, 6
    %v12 = vld [vmem:[%s11] ss:$8 sm:$0xf]
    %13 = vrot.lane.b32.xlu0 %v12, 96
    %v14 = vpop.permute.xlu0 %13
    %vm15 = vcmask 917248
    %16 = vst.msk [vmem:[#allocation0] sm:$0xf] %vm15, %v14
    %s17 = scalar_lea.vmem %s0, 5
    %v18 = vld [vmem:[%s17] ss:$8 sm:$0xf]
    %19 = vrot.lane.b32.xlu0 %v18, 80
    %v20 = vpop.permute.xlu0 %19
    %vm21 = vcmask 786048
    %22 = vst.msk [vmem:[#allocation0] sm:$0xf] %vm21, %v20
    %s23 = scalar_lea.vmem %s0, 4
    %v24 = vld [vmem:[%s23] ss:$8 sm:$0xf]
    %25 = vrot.lane.b32.xlu0 %v24, 64
    %v26 = vpop.permute.xlu0 %25
    %vm27 = vcmask 654848
    %28 = vst.msk [vmem:[#allocation0] sm:$0xf] %vm27, %v26
    %s29 = scalar_lea.vmem %s0, 3
    %v30 = vld [vmem:[%s29] ss:$8 sm:$0xf]
    %31 = vrot.lane.b32.xlu0 %v30, 48
    %v32 = vpop.permute.xlu0 %31
    %vm33 = vcmask 523648
    %34 = vst.msk [vmem:[#allocation0] sm:$0xf] %vm33, %v32
    %s35 = scalar_lea.vmem %s0, 2
    %v36 = vld [vmem:[%s35] ss:$8 sm:$0xf]
    %37 = vrot.lane.b32.xlu0 %v36, 32
    %v38 = vpop.permute.xlu0 %37
    %vm39 = vcmask 392448
    %40 = vst.msk [vmem:[#allocation0] sm:$0xf] %vm39, %v38
    %s41 = scalar_lea.vmem %s0, 1
    %v42 = vld [vmem:[%s41] ss:$8 sm:$0xf]
    %43 = vrot.lane.b32.xlu0 %v42, 16
    %v44 = vpop.permute.xlu0 %43
    %vm45 = vcmask 261248
    %46 = vst.msk [vmem:[#allocation0] sm:$0xf] %vm45, %v44
    %s48 = sshll.u32 1, 4
    %s49 = ssub.s32 %s48, 1
    %v51 = vld [vmem:[#allocation0] sm:%s49]
    %s52 = sshll.u32 1, 4
    %s53 = ssub.s32 %s52, 1
    %54 = vst [vmem:[%s1] sm:%s53] %v51

// kernel: squeeze.2
$region0: #{squeeze.2}
  %s0 = inlined_call_operand.hbm [shape: f32[2,1,16,16], index: 0, kind: input, shape index: {}]
  %s1 = inlined_call_operand.vmem [shape: f32[4,128], index: 1, kind: output, shape index: {}]
  $region1: #{squeeze.2} parent=0
    #allocation0 [shape = 'u8[16384]{0}', space=vmem, size = 0x4000, scoped, tag = 'operand span for operand 0']
    #allocation1 [shape = 's32[1]{0}', space=sflag, size = 0x4, scoped, tag = 'scoped memory for squeeze.2']
    #allocation2 [shape = 'u8[4096]{0}', space=vmem, size = 0x1000, scoped, tag = 'scoped mem for output reshape']
    %2 = vsyncpa [#allocation1], 0
    %s4 = ssub.s32 512, 512
    %5 = vsyncadd [#allocation1], %s4
    %s7 = sshll.u32 [#allocation0], 4
    %s8 = int_to_ptr.vmem [resolvable:$true] %s7
    %10 = dma.hbm_to_vmem [thread:$0]  %s0, 512, %s8, [#allocation1]
    %11 = dma.done [#allocation1], 512
    %v12 = vld [vmem:[#allocation0] ss:$8 sm:$0xf]
    %vm13 = vcmask 130048
    %14 = vst.msk [vmem:[#allocation2] sm:$0xf] %vm13, %v12
    %s15 = scalar_lea.vmem [#allocation0], 7
    %v16 = vld [vmem:[%s15] ss:$8 sm:$0xf]
    %17 = vrot.lane.b32.xlu0 %v16, 112
    %v18 = vpop.permute.xlu0 %17
    %vm19 = vcmask 1048448
    %20 = vst.msk [vmem:[#allocation2] sm:$0xf] %vm19, %v18
    %s21 = scalar_lea.vmem [#allocation0], 6
    %v22 = vld [vmem:[%s21] ss:$8 sm:$0xf]
    %23 = vrot.lane.b32.xlu0 %v22, 96
    %v24 = vpop.permute.xlu0 %23
    %vm25 = vcmask 917248
    %26 = vst.msk [vmem:[#allocation2] sm:$0xf] %vm25, %v24
    %s27 = scalar_lea.vmem [#allocation0], 5
    %v28 = vld [vmem:[%s27] ss:$8 sm:$0xf]
    %29 = vrot.lane.b32.xlu0 %v28, 80
    %v30 = vpop.permute.xlu0 %29
    %vm31 = vcmask 786048
    %32 = vst.msk [vmem:[#allocation2] sm:$0xf] %vm31, %v30
    %s33 = scalar_lea.vmem [#allocation0], 4
    %v34 = vld [vmem:[%s33] ss:$8 sm:$0xf]
    %35 = vrot.lane.b32.xlu0 %v34, 64
    %v36 = vpop.permute.xlu0 %35
    %vm37 = vcmask 654848
    %38 = vst.msk [vmem:[#allocation2] sm:$0xf] %vm37, %v36
    %s39 = scalar_lea.vmem [#allocation0], 3
    %v40 = vld [vmem:[%s39] ss:$8 sm:$0xf]
    %41 = vrot.lane.b32.xlu0 %v40, 48
    %v42 = vpop.permute.xlu0 %41
    %vm43 = vcmask 523648
    %44 = vst.msk [vmem:[#allocation2] sm:$0xf] %vm43, %v42
    %s45 = scalar_lea.vmem [#allocation0], 2
    %v46 = vld [vmem:[%s45] ss:$8 sm:$0xf]
    %47 = vrot.lane.b32.xlu0 %v46, 32
    %v48 = vpop.permute.xlu0 %47
    %vm49 = vcmask 392448
    %50 = vst.msk [vmem:[#allocation2] sm:$0xf] %vm49, %v48
    %s51 = scalar_lea.vmem [#allocation0], 1
    %v52 = vld [vmem:[%s51] ss:$8 sm:$0xf]
    %53 = vrot.lane.b32.xlu0 %v52, 16
    %v54 = vpop.permute.xlu0 %53
    %vm55 = vcmask 261248
    %56 = vst.msk [vmem:[#allocation2] sm:$0xf] %vm55, %v54
    %s58 = sshll.u32 1, 4
    %s59 = ssub.s32 %s58, 1
    %v61 = vld [vmem:[#allocation2] sm:%s59]
    %s62 = sshll.u32 1, 4
    %s63 = ssub.s32 %s62, 1
    %64 = vst [vmem:[%s1] sm:%s63] %v61
    %65 = vsyncpa [#allocation1], 1

// kernel: dice_loss.1
$region0: #{dice_loss.1}
  #allocation0 [shape = 'u32[]', space=smem, size = 0x4, offset = 0x4, fixed_abs, tag = 'smem constant byte address 0x4 - core index']
  #allocation1 [shape = 'u32[144,128]{1,0:T(1,128)}', space=vmem, size = 0x12000, scoped, tag = 'internal scratch']
  %s0 = inlined_call_operand.vmem [shape: f32[4,128], index: 0, kind: input, shape index: {}]
  %s1 = inlined_call_operand.vmem [shape: f32[4,128], index: 1, kind: input, shape index: {}]
  %s2 = inlined_call_operand.vmem [shape: f32[4,128], index: 2, kind: input, shape index: {}]
  %s3 = inlined_call_operand.vmem [shape: f32[4,128], index: 3, kind: output, shape index: {0}]
  %s4 = inlined_call_operand.vmem [shape: f32[4,128], index: 4, kind: output, shape index: {1}]
  %s5 = inlined_call_operand.vmem [shape: f32[4,128], index: 5, kind: output, shape index: {2}]
  %6 = xla_tuple %s3, %s4, %s5
  %s7 = sld [smem:[#allocation0]]
  $region42: #{dice_loss.1} parent=0
    _
  %s9 = ssub.s32 1, %s7
  %s10 = scalar_select 0, %s9, %s7
  // Predicated region
  $region2: #{dice_loss.1} parent=0 // pred_check
    _
  $region3: #{dice_loss.1} parent=0 // pred_check_branch
    %12 = sbr.rel (0) target = $region5
  $region4: #{dice_loss.1} parent=0 // pred_region
    _
  $region5: #{dice_loss.1} parent=0 // pred_fallthru
    _
  // Predicated region
  $region6: #{dice_loss.1} parent=0 // pred_check
    _
  $region7: #{dice_loss.1} parent=0 // pred_check_branch
    %14 = sbr.rel (0) target = $region9
  $region8: #{dice_loss.1} parent=0 // pred_region
    _
  $region9: #{dice_loss.1} parent=0 // pred_fallthru
    _
  // Predicated region
  $region10: #{dice_loss.1} parent=0 // pred_check
    _
  $region11: #{dice_loss.1} parent=0 // pred_check_branch
    %16 = sbr.rel (0) target = $region13
  $region12: #{dice_loss.1} parent=0 // pred_region
    _
  $region13: #{dice_loss.1} parent=0 // pred_fallthru
    _
  %p17 = scmp.eq.s32.totalorder 0, 0
  // Predicated region
  $region14: #{dice_loss.1} parent=0 // pred_check
    %p18 = pneg %p17
  $region15: #{dice_loss.1} parent=0 // pred_check_branch
    %20 = sbr.rel (%p18) target = $region17
  $region16: #{dice_loss.1} parent=0 // pred_region
    %21 = vst [vmem:[%s3] sm:$0xf] 0.0
    %22 = vst [vmem:[%s4] sm:$0xf] 0.0
    %23 = vst [vmem:[%s5] sm:$0xf] 0.0
  $region17: #{dice_loss.1} parent=0 // pred_fallthru
    _
  %v24 = vld [vmem:[%s0] sm:$0xf]
  %v25 = vld [vmem:[%s1] sm:$0xf]
  %v26 = vld [vmem:[%s2] sm:$0xf]
  %v27 = vmul.f32 %v24, %v26
  %v28 = vmul.f32 %v25, %v26
  %v29 = vmul.f32 %v27, %v25
  %v30 = vadd.f32 %v29, 0.0
  %v31 = vadd.f32 %v27, 0.0
  %v32 = vadd.f32 %v28, 0.0
  %v33 = vld [vmem:[%s3] sm:$0xf]
  %v34 = vadd.f32 %v33, %v30
  %35 = vst [vmem:[%s3] sm:$0xf] %v34
  %v36 = vld [vmem:[%s4] sm:$0xf]
  %v37 = vadd.f32 %v36, %v31
  %38 = vst [vmem:[%s4] sm:$0xf] %v37
  %v39 = vld [vmem:[%s5] sm:$0xf]
  %v40 = vadd.f32 %v39, %v32
  %41 = vst [vmem:[%s5] sm:$0xf] %v40
  // Predicated region
  $region18: #{dice_loss.1} parent=0 // pred_check
    _
  $region19: #{dice_loss.1} parent=0 // pred_check_branch
    %43 = sbr.rel (0) target = $region21
  $region20: #{dice_loss.1} parent=0 // pred_region
    _
  $region21: #{dice_loss.1} parent=0 // pred_fallthru
    _
  // Predicated region
  $region22: #{dice_loss.1} parent=0 // pred_check
    _
  $region23: #{dice_loss.1} parent=0 // pred_check_branch
    %45 = sbr.rel (0) target = $region25
  $region24: #{dice_loss.1} parent=0 // pred_region
    _
  $region25: #{dice_loss.1} parent=0 // pred_fallthru
    _
  // Predicated region
  $region26: #{dice_loss.1} parent=0 // pred_check
    _
  $region27: #{dice_loss.1} parent=0 // pred_check_branch
    %47 = sbr.rel (0) target = $region29
  $region28: #{dice_loss.1} parent=0 // pred_region
    _
  $region29: #{dice_loss.1} parent=0 // pred_fallthru
    _
  // Predicated region
  $region30: #{dice_loss.1} parent=0 // pred_check
    _
  $region31: #{dice_loss.1} parent=0 // pred_check_branch
    %49 = sbr.rel (0) target = $region33
  $region32: #{dice_loss.1} parent=0 // pred_region
    _
  $region33: #{dice_loss.1} parent=0 // pred_fallthru
    _
  // Predicated region
  $region34: #{dice_loss.1} parent=0 // pred_check
    _
  $region35: #{dice_loss.1} parent=0 // pred_check_branch
    %51 = sbr.rel (0) target = $region37
  $region36: #{dice_loss.1} parent=0 // pred_region
    _
  $region37: #{dice_loss.1} parent=0 // pred_fallthru
    _
  // Predicated region
  $region38: #{dice_loss.1} parent=0 // pred_check
    _
  $region39: #{dice_loss.1} parent=0 // pred_check_branch
    %53 = sbr.rel (0) target = $region41
  $region40: #{dice_loss.1} parent=0 // pred_region
    _
  $region41: #{dice_loss.1} parent=0 // pred_fallthru
    _

</llo_original>
